<compile_context>
chip_gen: v7x
topology: tpu7x:2x2x1
jax: 0.10.0
libtpu: 0.0.40
codegen_flags: <defaults>
</compile_context>

<pallas_src>
import jax
import jax.numpy as jnp
from jax.experimental import pallas as pl
from jax.experimental.pallas import tpu as pltpu


def _squeeze_copy_kernel(x_ref, o_ref):
    # x_ref is the (TILE_N, C) tile with the size-1 H/W dims already squeezed
    # away by the BlockSpec; this is a straight VMEM->VMEM identity copy.
    o_ref[...] = x_ref[...]


# ~2 MiB per buffer: with in+out double-buffered (~4 buffers) this stays well
# under the scoped-VMEM defaults on v5e (16 MiB), v6e (32 MiB) and v7x (32 MiB).
_PER_BUFFER_BYTES = 2 * 1024 * 1024


def _pick_tile_rows(n, c, itemsize):
    """Rows per block so that one (rows, C) buffer stays around 2 MiB."""
    rows = max(1, _PER_BUFFER_BYTES // max(1, c * itemsize))
    if rows >= n:
        return n                      # whole array fits in a single block
    rows = max(8, (rows // 8) * 8)    # keep the sublane dim 8-aligned
    return min(rows, n)


def squeeze_forward(x, tile_rows=None):
    """Reproduces Squeeze.forward: torch.squeeze(x, 3) then torch.squeeze(x, 2)."""
    if x.ndim != 4:
        raise ValueError("expected NCHW input")
    n, c, h, w = x.shape

    # torch.squeeze(x, dim=k) is a no-op when that dim's size != 1.  Those
    # branches are pure shape bookkeeping — no data movement, no kernel.
    if h != 1 or w != 1:
        out = x
        if w == 1:
            out = out.reshape(n, c, h)
        elif h == 1:
            out = out.reshape(n, c, w)
        return out

    # TODO(synk): in production simply `return x.reshape(n, c)` — squeezing
    # trailing size-1 dims is a zero-cost metadata change; the kernel below
    # exists only so other work can later be fused into it.

    if tile_rows is None:
        tile_rows = _pick_tile_rows(n, c, x.dtype.itemsize)
    tile_rows = min(tile_rows, n)

    grid = (pl.cdiv(n, tile_rows),)

    return pl.pallas_call(
        _squeeze_copy_kernel,
        out_shape=jax.ShapeDtypeStruct((n, c), x.dtype),
        grid_spec=pltpu.PrefetchScalarGridSpec(
            num_scalar_prefetch=0,
            grid=grid,
            in_specs=[
                # (TILE_N, C) tile; trailing size-1 H/W dims squeezed out so
                # the kernel sees a clean 2-D tile.  C (lane dim) is untouched.
                pl.BlockSpec(
                    (tile_rows, c, pl.Squeezed(), pl.Squeezed()),
                    lambda i: (i, 0, 0, 0),
                )
            ],
            out_specs=pl.BlockSpec((tile_rows, c), lambda i: (i, 0)),
        ),
        compiler_params=pltpu.CompilerParams(
            # "parallel": lets v7x shard the tiled copy across its two
            # TensorCores; neutral on single-core v5e/v6e.
            dimension_semantics=("parallel",),
        ),
    )(x)


if __name__ == "__main__":
    key = jax.random.PRNGKey(0)

    # Small NCHW input consistent with the module (squeeze needs H == W == 1).
    x_small = jax.random.normal(key, (2, 4, 1, 1), dtype=jnp.float32)
    y_small = squeeze_forward(x_small)
    jax.block_until_ready(y_small)
    ref_small = jnp.squeeze(jnp.squeeze(x_small, axis=3), axis=2)
    assert y_small.shape == (2, 4), y_small.shape
    assert y_small.dtype == x_small.dtype
    assert jnp.allclose(y_small, ref_small)

    # Also exercise the tiled (grid > 1) path with a lane-dense C == 128.
    x_tiled = jax.random.normal(key, (32, 128, 1, 1), dtype=jnp.float32)
    y_tiled = squeeze_forward(x_tiled, tile_rows=8)
    jax.block_until_ready(y_tiled)
    ref_tiled = jnp.squeeze(jnp.squeeze(x_tiled, axis=3), axis=2)
    assert y_tiled.shape == (32, 128), y_tiled.shape
    assert jnp.allclose(y_tiled, ref_tiled)

    print("KERNEL_OK")
</pallas_src>

<mosaic_0001>
module attributes {stable_mosaic.version = 11 : i64} {
  func.func @_squeeze_copy_kernel(%arg0: i32, %arg1: memref<2x4x1x1xf32, #tpu.memory_space<vmem>>, %arg2: memref<2x4xf32, #tpu.memory_space<vmem>>) attributes {dimension_semantics = [#tpu.dimension_semantics<parallel>], iteration_bounds = array<i64: 1>, scalar_prefetch = 0 : i64, scratch_operands = 0 : i64, tpu.core_type = #tpu.core_type<tc>, window_params = [{transform_indices = @transform_0, window_bounds = array<i64: 2, 4, 1, 1>}, {transform_indices = @transform_1, window_bounds = array<i64: 2, 4>}]} {
    %c0 = arith.constant 0 : index
    %c0_0 = arith.constant 0 : index
    %c0_1 = arith.constant 0 : index
    %c0_2 = arith.constant 0 : index
    %0 = vector.load %arg1[%c0, %c0_0, %c0_1, %c0_2] : memref<2x4x1x1xf32, #tpu.memory_space<vmem>>, vector<2x4x1x1xf32>
    %1 = vector.shape_cast %0 : vector<2x4x1x1xf32> to vector<2x4xf32>
    %c0_3 = arith.constant 0 : index
    %c0_4 = arith.constant 0 : index
    %2 = vector.load %arg2[%c0_3, %c0_4] : memref<2x4xf32, #tpu.memory_space<vmem>>, vector<2x4xf32>
    tpu.vector_store %arg2[%c0_3, %c0_4], %1 {strides = array<i32>} : memref<2x4xf32, #tpu.memory_space<vmem>>, vector<2x4xf32>,
    return
  }
  func.func @transform_0(%arg0: i32) -> (i32, i32, i32, i32) {
    %c0_i32 = arith.constant 0 : i32
    %c0_i32_0 = arith.constant 0 : i32
    %c0_i32_1 = arith.constant 0 : i32
    %c0_i32_2 = arith.constant 0 : i32
    return %arg0, %c0_i32, %c0_i32_0, %c0_i32_1 : i32, i32, i32, i32
  }
  func.func @transform_1(%arg0: i32) -> (i32, i32) {
    %c0_i32 = arith.constant 0 : i32
    %c0_i32_0 = arith.constant 0 : i32
    return %arg0, %c0_i32 : i32, i32
  }
}

</mosaic_0001>

<llo_original>
// kernel: tpu_custom_call.1
$region0: #{tpu_custom_call.1}
  #allocation0 [shape = 'u32[]', space=smem, size = 0x4, offset = 0x4, fixed_abs, tag = 'smem constant byte address 0x4 - core index']
  #allocation1 [shape = 'u32[144,128]{1,0:T(1,128)}', space=vmem, size = 0x12000, scoped, tag = 'internal scratch']
  %s0 = inlined_call_operand.vmem [shape: f32[2,4,1,1], index: 0, kind: input, shape index: {}]
  %s1 = inlined_call_operand.hbm [shape: f32[2,4], index: 1, kind: output, shape index: {}]
  %s2 = sld [smem:[#allocation0]]
  $region14: #{tpu_custom_call.1} parent=0
    _
  %s4 = ssub.s32 1, %s2
  %s5 = scalar_select 0, %s4, %s2
  $region1: #{tpu_custom_call.1} parent=0
    #allocation2 [shape = 'u8[1024]{0}', space=vmem, size = 0x400, scoped, tag = 'output window, operand 0, single buffered']
    #allocation3 [shape = 's32[1]{0}', space=sflag, size = 0x4, scoped, tag = 'scoped memory for tpu_custom_call.1']
    %6 = vsyncpa [#allocation3], 0
    // Predicated region
    $region2: #{tpu_custom_call.1} parent=1 // pred_check
      _
    $region3: #{tpu_custom_call.1} parent=1 // pred_check_branch
      %8 = sbr.rel (0) target = $region5
    $region4: #{tpu_custom_call.1} parent=1 // pred_region
      _
    $region5: #{tpu_custom_call.1} parent=1 // pred_fallthru
      _
    %v9 = vld [vmem:[%s0] sm:$0x1]
    %v10 = vld [vmem:[%s0 + $0x1] sm:$0x1]
    %v11 = vld [vmem:[%s0 + $0x2] sm:$0x1]
    %v12 = vld [vmem:[%s0 + $0x3] sm:$0x1]
    %v13 = vld [vmem:[%s0 + $0x4] sm:$0x1]
    %v14 = vld [vmem:[%s0 + $0x5] sm:$0x1]
    %v15 = vld [vmem:[%s0 + $0x6] sm:$0x1]
    %v16 = vld [vmem:[%s0 + $0x7] sm:$0x1]
    %v25 = vlaneseq
    %v26 = vshrl.u32 %v25, 7
    %v27 = vsub.s32 0, %v26
    %v28 = vrot.slane %v9, %v27
    %v29 = vlaneseq
    %v30 = vshrl.u32 %v29, 7
    %v31 = vsub.s32 0, %v30
    %v32 = vrot.slane %v10, %v31
    %v33 = vlaneseq
    %v34 = vshrl.u32 %v33, 7
    %v35 = vsub.s32 0, %v34
    %v36 = vrot.slane %v11, %v35
    %v37 = vlaneseq
    %v38 = vshrl.u32 %v37, 7
    %v39 = vsub.s32 0, %v38
    %v40 = vrot.slane %v12, %v39
    %v41 = vlaneseq
    %v42 = vshrl.u32 %v41, 7
    %v43 = vsub.s32 0, %v42
    %v44 = vrot.slane %v13, %v43
    %v45 = vlaneseq
    %v46 = vshrl.u32 %v45, 7
    %v47 = vsub.s32 0, %v46
    %v48 = vrot.slane %v14, %v47
    %v49 = vlaneseq
    %v50 = vshrl.u32 %v49, 7
    %v51 = vsub.s32 0, %v50
    %v52 = vrot.slane %v15, %v51
    %v53 = vlaneseq
    %v54 = vshrl.u32 %v53, 7
    %v55 = vsub.s32 0, %v54
    %v56 = vrot.slane %v16, %v55
    %vm57 = vcmask 1041409
    %v58 = vsel %vm57, %v32, %v28
    %vm59 = vcmask 1042434
    %v60 = vsel %vm59, %v36, %v58
    %vm61 = vcmask 1043459
    %v62 = vsel %vm61, %v40, %v60
    %v63 = vsel %vm57, %v48, %v44
    %v64 = vsel %vm59, %v52, %v63
    %v65 = vsel %vm61, %v56, %v64
    %66 = vset.pattern.permute.xlu0 0
    %67 = vperm.xlu0 %66, %v62
    %v68 = vpop.permute.xlu0 %67
    %69 = vset.pattern.permute.xlu0 0
    %70 = vperm.xlu0 %69, %v65
    %v71 = vpop.permute.xlu0 %70
    %v72 = vlaneseq
    %v73 = vand.u32 %v72, 127
    %v74 = vlaneseq
    %v75 = vshrl.u32 %v74, 7
    %v76 = vsub.s32 %v73, %v75
    %v77 = vrot.slane %v68, %v76
    %v78 = vlaneseq
    %v79 = vshrl.u32 %v78, 7
    %v80 = vsub.s32 %v73, %v79
    %v81 = vrot.slane %v71, %v80
    %v82 = vsel %vm57, %v81, %v77
    %vm84 = vcmask 25600
    %85 = vst.msk [vmem:[#allocation2] sm:$0x3] %vm84, %v82
    // Predicated region
    $region6: #{tpu_custom_call.1} parent=1 // pred_check
      _
    $region7: #{tpu_custom_call.1} parent=1 // pred_check_branch
      %87 = sbr.rel (0) target = $region9
    $region8: #{tpu_custom_call.1} parent=1 // pred_region
      %s89 = ssub.s32 32, 32
      %90 = vsyncadd [#allocation3], %s89
      %s92 = sshll.u32 [#allocation2], 4
      %s93 = int_to_ptr.vmem [resolvable:$true] %s92
      %95 = dma.vmem_to_hbm [thread:$0]  %s93, 32, %s1, [#allocation3]
    $region9: #{tpu_custom_call.1} parent=1 // pred_fallthru
      _
    // Predicated region
    $region10: #{tpu_custom_call.1} parent=1 // pred_check
      _
    $region11: #{tpu_custom_call.1} parent=1 // pred_check_branch
      %97 = sbr.rel (0) target = $region13
    $region12: #{tpu_custom_call.1} parent=1 // pred_region
      %98 = dma.done [#allocation3], 32
    $region13: #{tpu_custom_call.1} parent=1 // pred_fallthru
      _
    %99 = vsyncpa [#allocation3], 1

</llo_original>
